<compile_context>
chip_gen: v7x
topology: tpu7x:2x2x1
jax: 0.10.0
libtpu: 0.0.40
codegen_flags: <defaults>
</compile_context>

<pallas_src>
import functools

import jax
import jax.numpy as jnp
from jax.experimental import pallas as pl
from jax.experimental.pallas import tpu as pltpu


def _sublayer_connection_kernel(seed_ref,          # scalar-prefetch (SMEM)
                                x_ref, gamma_ref, beta_ref, w_ref, b_ref,
                                o_ref,
                                *, hidden, tm, eps, dropout_p, mxu_dtype):
    x = x_ref[...].astype(jnp.float32)                        # (tm, H)

    # ---- LayerNorm (mean / unbiased std over last dim, eps added to std) ----
    mean = jnp.mean(x, axis=-1, keepdims=True)
    diff = x - mean
    var = jnp.sum(diff * diff, axis=-1, keepdims=True) * (1.0 / (hidden - 1))
    rinv = 1.0 / (jnp.sqrt(var) + eps)                        # (tm, 1) only
    y = gamma_ref[...] * (diff * rinv) + beta_ref[...]        # (tm, H)

    # ---- sublayer: dense projection on the MXU (bf16 in, f32 accumulate) ----
    h = jnp.dot(y.astype(mxu_dtype), w_ref[...].astype(mxu_dtype),
                preferred_element_type=jnp.float32) + b_ref[...]

    # ---- dropout (training-mode, inverted), integer-space mask ----
    if dropout_p > 0.0:
        # Counter-based hash PRNG: portable (plain int32/uint32 VPU ops, no
        # pltpu.prng_*), decorrelated across tiles, safe under "parallel".
        threshold = jnp.uint32(min(int(round(dropout_p * 4294967296.0)),
                                   4294967295))
        inv_keep = jnp.float32(1.0 / (1.0 - dropout_p))
        row0 = (pl.program_id(0) * tm).astype(jnp.uint32)
        rows = jax.lax.broadcasted_iota(jnp.int32, (tm, hidden), 0).astype(jnp.uint32)
        cols = jax.lax.broadcasted_iota(jnp.int32, (tm, hidden), 1).astype(jnp.uint32)
        idx = (row0 + rows) * jnp.uint32(hidden) + cols        # global element id
        s = seed_ref[0].astype(jnp.uint32)
        h32 = idx * jnp.uint32(0x9E3779B1) + s * jnp.uint32(0xB5297A4D)
        h32 = h32 ^ (h32 >> 16)
        h32 = h32 * jnp.uint32(0x7FEB352D)
        h32 = h32 ^ (h32 >> 15)
        h32 = h32 * jnp.uint32(0x846CA68B)
        h32 = h32 ^ (h32 >> 16)
        keep = h32 >= threshold                                # P(keep) = 1 - p
        h = jnp.where(keep, h * inv_keep, jnp.float32(0.0))

    # ---- residual ----
    o_ref[...] = (x + h).astype(o_ref.dtype)


def sublayer_connection(x, gamma, beta, w, b, seed, *, dropout_p=0.1,
                        eps=1e-6, tm=256, mxu_dtype=jnp.bfloat16):
    """x: (M, H) tokens-by-hidden. Returns x + dropout(norm(x) @ w + b)."""
    M, H = x.shape
    tm = min(tm, M)
    assert M % tm == 0, "token count must be divisible by the row tile"
    assert tm % 8 == 0, "row tile must respect the (8,128) f32 sublane tile"
    # (bf16 activations would additionally need tm % 16 == 0.)

    w = w.astype(mxu_dtype)          # feed the MXU its native dtype; halves W DMA

    # Scoped-VMEM budget: double-buffered x/out tiles + resident W + headroom.
    tile_bytes = tm * H * jnp.dtype(x.dtype).itemsize
    vmem_need = (4 * tile_bytes                     # x + out, double-buffered
                 + H * H * jnp.dtype(mxu_dtype).itemsize
                 + 8 * H * 4                        # gamma / beta / bias
                 + 6 * tm * H * 4)                  # f32 temporaries headroom
    vmem_limit = min(max(int(vmem_need * 1.25), 32 * 1024 * 1024),
                     64 * 1024 * 1024)              # stay within v7x physical VMEM

    kernel = functools.partial(_sublayer_connection_kernel,
                               hidden=H, tm=tm, eps=eps,
                               dropout_p=float(dropout_p), mxu_dtype=mxu_dtype)
    return pl.pallas_call(
        kernel,
        out_shape=jax.ShapeDtypeStruct((M, H), x.dtype),
        grid_spec=pltpu.PrefetchScalarGridSpec(
            num_scalar_prefetch=1,                           # seed -> SMEM
            grid=(M // tm,),
            in_specs=[
                pl.BlockSpec((tm, H), lambda i, seed: (i, 0)),   # x
                pl.BlockSpec((1, H), lambda i, seed: (0, 0)),    # gamma (a_2)
                pl.BlockSpec((1, H), lambda i, seed: (0, 0)),    # beta  (b_2)
                pl.BlockSpec((H, H), lambda i, seed: (0, 0)),    # W (resident)
                pl.BlockSpec((1, H), lambda i, seed: (0, 0)),    # bias
            ],
            out_specs=pl.BlockSpec((tm, H), lambda i, seed: (i, 0)),
        ),
        compiler_params=pltpu.CompilerParams(
            dimension_semantics=("parallel",),   # tiles are independent (hash PRNG)
            vmem_limit_bytes=vmem_limit),
    )(seed, x, gamma, beta, w, b)


if __name__ == "__main__":
    key = jax.random.PRNGKey(0)
    B, S, H = 2, 8, 32
    dropout_p = 0.1

    kx, kw, kb = jax.random.split(key, 3)
    x = jax.random.normal(kx, (B, S, H), dtype=jnp.float32)

    # Deterministic parameter init (shapes from the module __init__).
    gamma = jnp.ones((1, H), dtype=jnp.float32)                  # LayerNorm a_2
    beta = jnp.zeros((1, H), dtype=jnp.float32)                  # LayerNorm b_2
    w = jax.random.normal(kw, (H, H), dtype=jnp.float32) * 0.05  # sublayer weight
    b = jax.random.normal(kb, (1, H), dtype=jnp.float32) * 0.01  # sublayer bias
    seed = jnp.array([1234], dtype=jnp.int32)

    x2d = x.reshape(B * S, H)
    out = sublayer_connection(x2d, gamma, beta, w, b, seed, dropout_p=dropout_p)
    out = out.reshape(B, S, H)
    jax.block_until_ready(out)

    # Dropped positions leave the residual untouched -> loose rate sanity check.
    drop_frac = float(jnp.mean((out == x).astype(jnp.float32)))
    assert 0.01 < drop_frac < 0.30, f"unexpected dropout rate {drop_frac}"

    # Deterministic-path check (dropout off) against a pure-JAX reference that
    # uses the same bf16 MXU operands / f32 accumulation as the kernel.
    out_nodrop = sublayer_connection(x2d, gamma, beta, w, b, seed,
                                     dropout_p=0.0).reshape(B, S, H)
    mean = jnp.mean(x, axis=-1, keepdims=True)
    std = jnp.std(x, axis=-1, keepdims=True, ddof=1)
    y_ref = gamma[0] * (x - mean) / (std + 1e-6) + beta[0]
    proj = jnp.einsum("bsh,hk->bsk",
                      y_ref.astype(jnp.bfloat16), w.astype(jnp.bfloat16),
                      preferred_element_type=jnp.float32) + b[0]
    ref = x + proj
    assert jnp.allclose(out_nodrop, ref, atol=2e-2, rtol=2e-2)

    print("KERNEL_OK")
</pallas_src>

<mosaic_0001>
module attributes {stable_mosaic.version = 11 : i64} {
  func.func @_sublayer_connection_kernel(%arg0: i32, %arg1: memref<1xi32, #tpu.memory_space<smem>>, %arg2: memref<16x32xf32, #tpu.memory_space<vmem>>, %arg3: memref<1x32xf32, #tpu.memory_space<vmem>>, %arg4: memref<1x32xf32, #tpu.memory_space<vmem>>, %arg5: memref<32x32xbf16, #tpu.memory_space<vmem>>, %arg6: memref<1x32xf32, #tpu.memory_space<vmem>>, %arg7: memref<16x32xf32, #tpu.memory_space<vmem>>) attributes {dimension_semantics = [#tpu.dimension_semantics<parallel>], iteration_bounds = array<i64: 1>, scalar_prefetch = 1 : i64, scratch_operands = 0 : i64, tpu.core_type = #tpu.core_type<tc>, window_params = [{transform_indices = @transform_0, window_bounds = array<i64: 16, 32>}, {pipeline_mode = #tpu.pipeline_mode<synchronous>, transform_indices = @transform_1, window_bounds = array<i64: 1, 32>}, {pipeline_mode = #tpu.pipeline_mode<synchronous>, transform_indices = @transform_2, window_bounds = array<i64: 1, 32>}, {pipeline_mode = #tpu.pipeline_mode<synchronous>, transform_indices = @transform_3, window_bounds = array<i64: 32, 32>}, {pipeline_mode = #tpu.pipeline_mode<synchronous>, transform_indices = @transform_4, window_bounds = array<i64: 1, 32>}, {transform_indices = @transform_5, window_bounds = array<i64: 16, 32>}]} {
    %c0 = arith.constant 0 : index
    %c0_0 = arith.constant 0 : index
    %0 = vector.load %arg2[%c0, %c0_0] : memref<16x32xf32, #tpu.memory_space<vmem>>, vector<16x32xf32>
    %cst = arith.constant dense<0.000000e+00> : vector<16xf32>
    %1 = vector.multi_reduction <add>, %0, %cst [1] : vector<16x32xf32> to vector<16xf32>
    %2 = vector.shape_cast %1 : vector<16xf32> to vector<16x1xf32>
    %cst_1 = arith.constant 3.200000e+01 : f32
    %3 = vector.broadcast %cst_1 : f32 to vector<16x1xf32>
    %4 = arith.divf %2, %3 : vector<16x1xf32>
    %5 = vector.broadcast %4 : vector<16x1xf32> to vector<16x32xf32>
    %6 = arith.subf %0, %5 : vector<16x32xf32>
    %7 = arith.mulf %6, %6 : vector<16x32xf32>
    %cst_2 = arith.constant dense<0.000000e+00> : vector<16xf32>
    %8 = vector.multi_reduction <add>, %7, %cst_2 [1] : vector<16x32xf32> to vector<16xf32>
    %9 = vector.shape_cast %8 : vector<16xf32> to vector<16x1xf32>
    %cst_3 = arith.constant 0.0322580636 : f32
    %10 = vector.broadcast %cst_3 : f32 to vector<16x1xf32>
    %11 = arith.mulf %9, %10 : vector<16x1xf32>
    %12 = math.sqrt %11 : vector<16x1xf32>
    %cst_4 = arith.constant 9.99999997E-7 : f32
    %13 = vector.broadcast %cst_4 : f32 to vector<16x1xf32>
    %14 = arith.addf %12, %13 : vector<16x1xf32>
    %cst_5 = arith.constant 1.000000e+00 : f32
    %15 = vector.broadcast %cst_5 : f32 to vector<16x1xf32>
    %16 = arith.divf %15, %14 : vector<16x1xf32>
    %c0_6 = arith.constant 0 : index
    %c0_7 = arith.constant 0 : index
    %17 = vector.load %arg3[%c0_6, %c0_7] : memref<1x32xf32, #tpu.memory_space<vmem>>, vector<1x32xf32>
    %18 = vector.broadcast %16 : vector<16x1xf32> to vector<16x32xf32>
    %19 = arith.mulf %6, %18 : vector<16x32xf32>
    %20 = vector.broadcast %17 : vector<1x32xf32> to vector<16x32xf32>
    %21 = arith.mulf %20, %19 : vector<16x32xf32>
    %c0_8 = arith.constant 0 : index
    %c0_9 = arith.constant 0 : index
    %22 = vector.load %arg4[%c0_8, %c0_9] : memref<1x32xf32, #tpu.memory_space<vmem>>, vector<1x32xf32>
    %23 = vector.broadcast %22 : vector<1x32xf32> to vector<16x32xf32>
    %24 = arith.addf %21, %23 : vector<16x32xf32>
    %25 = arith.truncf %24 : vector<16x32xf32> to vector<16x32xbf16>
    %c0_10 = arith.constant 0 : index
    %c0_11 = arith.constant 0 : index
    %26 = vector.load %arg5[%c0_10, %c0_11] : memref<32x32xbf16, #tpu.memory_space<vmem>>, vector<32x32xbf16>
    %cst_12 = arith.constant dense<0.000000e+00> : vector<16x32xf32>
    %27 = tpu.matmul %25, %26, %cst_12 {dimension_numbers = #tpu.dot_dimension_numbers<[1], [0], [0], [1], [0, 0, 1, 1], [], []>} : vector<16x32xbf16>, vector<32x32xbf16>, vector<16x32xf32> -> vector<16x32xf32>
    %c0_13 = arith.constant 0 : index
    %c0_14 = arith.constant 0 : index
    %28 = vector.load %arg6[%c0_13, %c0_14] : memref<1x32xf32, #tpu.memory_space<vmem>>, vector<1x32xf32>
    %29 = vector.broadcast %28 : vector<1x32xf32> to vector<16x32xf32>
    %30 = arith.addf %27, %29 : vector<16x32xf32>
    %c16_i32 = arith.constant 16 : i32
    %31 = arith.muli %arg0, %c16_i32 : i32
    %32 = tpu.iota {dimensions = array<i32: 0>} : vector<16x32xi32>
    %33 = tpu.iota {dimensions = array<i32: 1>} : vector<16x32xi32>
    %34 = vector.broadcast %31 : i32 to vector<16x32xi32>
    %35 = arith.addi %34, %32 : vector<16x32xi32>
    %c32_i32 = arith.constant 32 : i32
    %36 = vector.broadcast %c32_i32 : i32 to vector<16x32xi32>
    %37 = arith.muli %35, %36 : vector<16x32xi32>
    %38 = arith.addi %37, %33 : vector<16x32xi32>
    %c0_15 = arith.constant 0 : index
    %39 = memref.load %arg1[%c0_15] : memref<1xi32, #tpu.memory_space<smem>>
    %c-1640531535_i32 = arith.constant -1640531535 : i32
    %40 = vector.broadcast %c-1640531535_i32 : i32 to vector<16x32xi32>
    %41 = arith.muli %38, %40 : vector<16x32xi32>
    %c-1255572915_i32 = arith.constant -1255572915 : i32
    %42 = arith.muli %39, %c-1255572915_i32 : i32
    %43 = vector.broadcast %42 : i32 to vector<16x32xi32>
    %44 = arith.addi %41, %43 : vector<16x32xi32>
    %c16_i32_16 = arith.constant 16 : i32
    %45 = vector.broadcast %c16_i32_16 : i32 to vector<16x32xi32>
    %46 = arith.shrui %44, %45 : vector<16x32xi32>
    %47 = arith.xori %44, %46 : vector<16x32xi32>
    %c2146121005_i32 = arith.constant 2146121005 : i32
    %48 = vector.broadcast %c2146121005_i32 : i32 to vector<16x32xi32>
    %49 = arith.muli %47, %48 : vector<16x32xi32>
    %c15_i32 = arith.constant 15 : i32
    %50 = vector.broadcast %c15_i32 : i32 to vector<16x32xi32>
    %51 = arith.shrui %49, %50 : vector<16x32xi32>
    %52 = arith.xori %49, %51 : vector<16x32xi32>
    %c-2073254261_i32 = arith.constant -2073254261 : i32
    %53 = vector.broadcast %c-2073254261_i32 : i32 to vector<16x32xi32>
    %54 = arith.muli %52, %53 : vector<16x32xi32>
    %c16_i32_17 = arith.constant 16 : i32
    %55 = vector.broadcast %c16_i32_17 : i32 to vector<16x32xi32>
    %56 = arith.shrui %54, %55 : vector<16x32xi32>
    %57 = arith.xori %54, %56 : vector<16x32xi32>
    %c429496730_i32 = arith.constant 429496730 : i32
    %58 = vector.broadcast %c429496730_i32 : i32 to vector<16x32xi32>
    %59 = arith.cmpi uge, %57, %58 : vector<16x32xi32>
    %cst_18 = arith.constant 1.11111116 : f32
    %60 = vector.broadcast %cst_18 : f32 to vector<16x32xf32>
    %61 = arith.mulf %30, %60 : vector<16x32xf32>
    %cst_19 = arith.constant 0.000000e+00 : f32
    %62 = vector.broadcast %cst_19 : f32 to vector<16x32xf32>
    %63 = arith.select %59, %61, %62 : vector<16x32xi1>, vector<16x32xf32>
    %64 = arith.addf %0, %63 : vector<16x32xf32>
    %c0_20 = arith.constant 0 : index
    %c0_21 = arith.constant 0 : index
    %65 = vector.load %arg7[%c0_20, %c0_21] : memref<16x32xf32, #tpu.memory_space<vmem>>, vector<16x32xf32>
    tpu.vector_store %arg7[%c0_20, %c0_21], %64 {strides = array<i32>} : memref<16x32xf32, #tpu.memory_space<vmem>>, vector<16x32xf32>,
    return
  }
  func.func @transform_0(%arg0: i32, %arg1: memref<1xi32, #tpu.memory_space<smem>>) -> (i32, i32) {
    %c0_i32 = arith.constant 0 : i32
    %c0_i32_0 = arith.constant 0 : i32
    return %arg0, %c0_i32 : i32, i32
  }
  func.func @transform_1(%arg0: i32, %arg1: memref<1xi32, #tpu.memory_space<smem>>) -> (i32, i32) {
    %c0_i32 = arith.constant 0 : i32
    %c0_i32_0 = arith.constant 0 : i32
    %c0_i32_1 = arith.constant 0 : i32
    return %c0_i32, %c0_i32_0 : i32, i32
  }
  func.func @transform_2(%arg0: i32, %arg1: memref<1xi32, #tpu.memory_space<smem>>) -> (i32, i32) {
    %c0_i32 = arith.constant 0 : i32
    %c0_i32_0 = arith.constant 0 : i32
    %c0_i32_1 = arith.constant 0 : i32
    return %c0_i32, %c0_i32_0 : i32, i32
  }
  func.func @transform_3(%arg0: i32, %arg1: memref<1xi32, #tpu.memory_space<smem>>) -> (i32, i32) {
    %c0_i32 = arith.constant 0 : i32
    %c0_i32_0 = arith.constant 0 : i32
    %c0_i32_1 = arith.constant 0 : i32
    return %c0_i32, %c0_i32_0 : i32, i32
  }
  func.func @transform_4(%arg0: i32, %arg1: memref<1xi32, #tpu.memory_space<smem>>) -> (i32, i32) {
    %c0_i32 = arith.constant 0 : i32
    %c0_i32_0 = arith.constant 0 : i32
    %c0_i32_1 = arith.constant 0 : i32
    return %c0_i32, %c0_i32_0 : i32, i32
  }
  func.func @transform_5(%arg0: i32, %arg1: memref<1xi32, #tpu.memory_space<smem>>) -> (i32, i32) {
    %c0_i32 = arith.constant 0 : i32
    %c0_i32_0 = arith.constant 0 : i32
    return %arg0, %c0_i32 : i32, i32
  }
}

</mosaic_0001>

<llo_original>
// kernel: tpu_custom_call.1
$region0: #{tpu_custom_call.1}
  #allocation0 [shape = 'u32[]', space=smem, size = 0x4, offset = 0x4, fixed_abs, tag = 'smem constant byte address 0x4 - core index']
  #allocation1 [shape = 'u32[144,128]{1,0:T(1,128)}', space=vmem, size = 0x12000, scoped, tag = 'internal scratch']
  #allocation2 [shape = 's32[1]{0}', space=sflag, size = 0x4, scoped, tag = 'scoped memory for tpu_custom_call.1']
  #allocation3 [shape = 's32[1]{0:T(128)S(6)}', space=smem, size = 0x200, scoped, tag = 'prefetched SMEM operand 0']
  %s0 = inlined_call_operand.<no memory space> [shape: s32[1], index: 0, kind: input, shape index: {}]
  %s1 = inlined_call_operand.hbm [shape: f32[16,32], index: 1, kind: input, shape index: {}]
  %s2 = inlined_call_operand.vmem [shape: f32[1,32], index: 2, kind: input, shape index: {}]
  %s3 = inlined_call_operand.vmem [shape: f32[1,32], index: 3, kind: input, shape index: {}]
  %s4 = inlined_call_operand.hbm [shape: bf16[32,32], index: 4, kind: input, shape index: {}]
  %s5 = inlined_call_operand.vmem [shape: f32[1,32], index: 5, kind: input, shape index: {}]
  %s6 = inlined_call_operand.hbm [shape: f32[16,32], index: 6, kind: output, shape index: {}]
  %s7 = sld [smem:[#allocation0]]
  $region38: #{tpu_custom_call.1} parent=0
    _
  %s9 = ssub.s32 1, %s7
  %s10 = scalar_select 0, %s9, %s7
  %11 = sst [smem:[#allocation3]] %s0
  $region1: #{tpu_custom_call.1} parent=0
    #allocation4 [shape = 'u8[8192]{0}', space=vmem, size = 0x2000, scoped, tag = 'input window, operand 1, single buffered']
    #allocation5 [shape = 's32[1]{0}', space=sflag, size = 0x4, scoped, tag = 'scoped memory for tpu_custom_call.1']
    #allocation6 [shape = 's32[1]{0}', space=sflag, size = 0x4, scoped, tag = 'scoped memory for tpu_custom_call.1']
    #allocation7 [shape = 'u8[8192]{0}', space=vmem, size = 0x2000, scoped, tag = 'input window, operand 4, single buffered']
    #allocation8 [shape = 's32[1]{0}', space=sflag, size = 0x4, scoped, tag = 'scoped memory for tpu_custom_call.1']
    #allocation9 [shape = 'u8[8192]{0}', space=vmem, size = 0x2000, scoped, tag = 'output window, operand 0, single buffered']
    %12 = vsyncpa [#allocation5], 0
    %13 = vsyncpa [#allocation8], 0
    %14 = vsyncpa [#allocation6], 0
    // Predicated region
    $region2: #{tpu_custom_call.1} parent=1 // pred_check
      _
    $region3: #{tpu_custom_call.1} parent=1 // pred_check_branch
      %16 = sbr.rel (0) target = $region5
    $region4: #{tpu_custom_call.1} parent=1 // pred_region
      %s18 = ssub.s32 256, 256
      %19 = vsyncadd [#allocation5], %s18
      %s20 = sshll.u32 [#allocation4], 4
      %s21 = int_to_ptr.vmem [resolvable:$true] %s20
      %26 = dma.hbm_to_vmem [thread:$0]  %s1, 256, %s21, [#allocation5], 128, 128, 8
    $region5: #{tpu_custom_call.1} parent=1 // pred_fallthru
      _
    // Predicated region
    $region6: #{tpu_custom_call.1} parent=1 // pred_check
      _
    $region7: #{tpu_custom_call.1} parent=1 // pred_check_branch
      %28 = sbr.rel (0) target = $region9
    $region8: #{tpu_custom_call.1} parent=1 // pred_region
      _
    $region9: #{tpu_custom_call.1} parent=1 // pred_fallthru
      _
    // Predicated region
    $region10: #{tpu_custom_call.1} parent=1 // pred_check
      _
    $region11: #{tpu_custom_call.1} parent=1 // pred_check_branch
      %30 = sbr.rel (0) target = $region13
    $region12: #{tpu_custom_call.1} parent=1 // pred_region
      _
    $region13: #{tpu_custom_call.1} parent=1 // pred_fallthru
      _
    // Predicated region
    $region14: #{tpu_custom_call.1} parent=1 // pred_check
      _
    $region15: #{tpu_custom_call.1} parent=1 // pred_check_branch
      %32 = sbr.rel (0) target = $region17
    $region16: #{tpu_custom_call.1} parent=1 // pred_region
      %s34 = ssub.s32 256, 256
      %35 = vsyncadd [#allocation8], %s34
      %s36 = sshll.u32 [#allocation7], 4
      %s37 = int_to_ptr.vmem [resolvable:$true] %s36
      %42 = dma.hbm_to_vmem [thread:$0]  %s4, 256, %s37, [#allocation8], 64, 64, 4
    $region17: #{tpu_custom_call.1} parent=1 // pred_fallthru
      _
    // Predicated region
    $region18: #{tpu_custom_call.1} parent=1 // pred_check
      _
    $region19: #{tpu_custom_call.1} parent=1 // pred_check_branch
      %44 = sbr.rel (0) target = $region21
    $region20: #{tpu_custom_call.1} parent=1 // pred_region
      _
    $region21: #{tpu_custom_call.1} parent=1 // pred_fallthru
      _
    // Predicated region
    $region22: #{tpu_custom_call.1} parent=1 // pred_check
      _
    $region23: #{tpu_custom_call.1} parent=1 // pred_check_branch
      %46 = sbr.rel (0) target = $region25
    $region24: #{tpu_custom_call.1} parent=1 // pred_region
      %47 = dma.done [#allocation5], 256
    $region25: #{tpu_custom_call.1} parent=1 // pred_fallthru
      _
    // Predicated region
    $region26: #{tpu_custom_call.1} parent=1 // pred_check
      _
    $region27: #{tpu_custom_call.1} parent=1 // pred_check_branch
      %49 = sbr.rel (0) target = $region29
    $region28: #{tpu_custom_call.1} parent=1 // pred_region
      %50 = dma.done [#allocation8], 256
    $region29: #{tpu_custom_call.1} parent=1 // pred_fallthru
      _
    %v52 = vld [vmem:[#allocation4] sm:$0xff]
    %v53 = vld [vmem:[#allocation4 + $0x8] sm:$0xff]
    %vm54 = vcmask 261120
    %v55 = vsel %vm54, %v52, 0.0
    %56 = vadd.xlane.f32.xlu0 %v55
    %v57 = vpop.xlane.xlu0 %56
    %v58 = vsel %vm54, %v53, 0.0
    %59 = vadd.xlane.f32.xlu0 %v58
    %v60 = vpop.xlane.xlu0 %59
    %v61 = vrcp.pop 32.0
    %v62 = vmul.f32 %v57, %v61
    %v63 = vmul.f32 %v60, %v61
    %v64 = vsub.f32 %v52, %v62
    %v65 = vsub.f32 %v53, %v63
    %v66 = vmul.f32 %v64, %v64
    %v67 = vmul.f32 %v65, %v65
    %v68 = vsel %vm54, %v66, 0.0
    %69 = vadd.xlane.f32.xlu0 %v68
    %v70 = vpop.xlane.xlu0 %69
    %v71 = vsel %vm54, %v67, 0.0
    %72 = vadd.xlane.f32.xlu0 %v71
    %v73 = vpop.xlane.xlu0 %72
    %v74 = vmul.f32 %v70, 0.032258064
    %v75 = vmul.f32 %v73, 0.032258064
    %v76 = vrsqrt.pop %v74
    %v77 = vmul.f32 %v74, %v76
    %vm78 = vcmp.eq.f32.partialorder %v74, inf
    %v79 = vsel %vm78, %v74, %v77
    %vm80 = vcmp.eq.f32.partialorder %v74, 0.0
    %v81 = vand.u32 %v74, 2147483648
    %v82 = vsel %vm80, %v81, %v79
    %v83 = vrsqrt.pop %v75
    %v84 = vmul.f32 %v75, %v83
    %vm85 = vcmp.eq.f32.partialorder %v75, inf
    %v86 = vsel %vm85, %v75, %v84
    %vm87 = vcmp.eq.f32.partialorder %v75, 0.0
    %v88 = vand.u32 %v75, 2147483648
    %v89 = vsel %vm87, %v88, %v86
    %v90 = vadd.f32 %v82, 1e-06
    %v91 = vadd.f32 %v89, 1e-06
    %v92 = vrcp.pop %v90
    %v93 = vmul.f32 1.0, %v92
    %v94 = vrcp.pop %v91
    %v95 = vmul.f32 1.0, %v94
    %v96 = vld [vmem:[%s2] sm:$0x1]
    %v97 = vmul.f32 %v64, %v93
    %v98 = vmul.f32 %v65, %v95
    %v100 = vlaneseq
    %v101 = vshrl.u32 %v100, 7
    %v102 = vsub.s32 0, %v101
    %v103 = vrot.slane %v96, %v102
    %v105 = vmul.f32 %v103, %v97
    %v106 = vmul.f32 %v103, %v98
    %v107 = vld [vmem:[%s3] sm:$0x1]
    %v109 = vlaneseq
    %v110 = vshrl.u32 %v109, 7
    %v111 = vsub.s32 0, %v110
    %v112 = vrot.slane %v107, %v111
    %v114 = vadd.f32 %v105, %v112
    %v115 = vadd.f32 %v106, %v112
    %v116 = vpack.c.bf16 %v115, %v114
    %v117 = vld [vmem:[#allocation7] sm:$0xf]
    %v118 = vld [vmem:[#allocation7 + $0x4] sm:$0xf]
    %v119 = vld [vmem:[#allocation7 + $0x8] sm:$0xf]
    %v120 = vld [vmem:[#allocation7 + $0xc] sm:$0xf]
    %v121 = vld [vmem:[%s5] sm:$0x1]
    %v123 = vlaneseq
    %v124 = vshrl.u32 %v123, 7
    %v125 = vsub.s32 0, %v124
    %v126 = vrot.slane %v121, %v125
    %v132 = vunpack.c.l.b16 %v117
    %v133 = vunpack.c.l.b16 %v118
    %v134 = vunpack.c.l.b16 %v119
    %v135 = vunpack.c.l.b16 %v120
    %v136 = vpack.c.b16 %v133, %v132
    %v137 = vpack.c.b16 %v135, %v134
    %v141 = vsel %vm54, %v116, 0
    %143 = vmatprep.subr.bf16.mxu0 0
    %144 = vmatpush1.bf16.msra.mxu0 %v136
    %145 = vmatprep.subr.bf16.mxu0 0
    %146 = vmatpush1.bf16.msra.mxu0 %v137
    %147 = vmatprep.subr.bf16.mxu0 0
    %148 = vmatpush1.bf16.msra.mxu0 0
    %149 = vmatprep.subr.bf16.mxu0 0
    %150 = vmatpush1.bf16.msra.mxu0 0
    %151 = vmatprep.subr.bf16.mxu0 0
    %152 = vmatpush1.bf16.msra.mxu0 0
    %153 = vmatprep.subr.bf16.mxu0 0
    %154 = vmatpush1.bf16.msra.mxu0 0
    %155 = vmatprep.subr.bf16.mxu0 0
    %156 = vmatpush1.bf16.msra.mxu0 0
    %157 = vmatprep.subr.bf16.mxu0 0
    %158 = vmatpush1.bf16.msra.mxu0 0
    %159 = vmatprep.subr.bf16.mxu0 0
    %160 = vmatpush1.bf16.msra.mxu0 0
    %161 = vmatprep.subr.bf16.mxu0 0
    %162 = vmatpush1.bf16.msra.mxu0 0
    %163 = vmatprep.subr.bf16.mxu0 0
    %164 = vmatpush1.bf16.msra.mxu0 0
    %165 = vmatprep.subr.bf16.mxu0 0
    %166 = vmatpush1.bf16.msra.mxu0 0
    %167 = vmatprep.subr.bf16.mxu0 0
    %168 = vmatpush1.bf16.msra.mxu0 0
    %169 = vmatprep.subr.bf16.mxu0 0
    %170 = vmatpush1.bf16.msra.mxu0 0
    %171 = vmatprep.subr.bf16.mxu0 0
    %172 = vmatpush1.bf16.msra.mxu0 0
    %173 = vmatprep.subr.bf16.mxu0 0
    %174 = vmatpush1.bf16.msra.mxu0 0
    %175 = vmatprep.mubr.bf16.mxu0 0
    %176 = vmatmul.mubr.bf16.gmra.mrb[0].mxu0 %v141
    %v177 = vpop.f32.mrb[0].mxu0
    %v178 = vadd.f32 %v126, %v177
    %v179 = vpop.f32.mrb[0].mxu0
    %v180 = vpop.f32.mrb[0].mxu0
    %v181 = vadd.f32 %v126, %v180
    %v182 = vpop.f32.mrb[0].mxu0
    %183 = vdwg.mxu0
    %s184 = smul.u32 0, 16
    %v185 = vlaneseq
    %v186 = vshrl.u32 %v185, 7
    %v187 = vadd.s32 %v186, 8
    %v188 = vlaneseq
    %v189 = vand.u32 %v188, 127
    %v190 = vstv %s184
    %v191 = vadd.s32 %v190, %v186
    %v192 = vadd.s32 %v190, %v187
    %v193 = vmul.u32 %v191, 32
    %v194 = vmul.u32 %v192, 32
    %v195 = vadd.s32 %v193, %v189
    %v196 = vadd.s32 %v194, %v189
    %s197 = sld [smem:[#allocation3]]
    %v198 = vmul.u32 %v195, 2654435761
    %v199 = vmul.u32 %v196, 2654435761
    %s200 = smul.u32 %s197, 3039394381
    %v201 = vstv %s200
    %v202 = vadd.s32 %v198, %v201
    %v203 = vadd.s32 %v199, %v201
    %v204 = vshrl.u32 %v202, 16
    %v205 = vshrl.u32 %v203, 16
    %v206 = vxor.u32 %v202, %v204
    %v207 = vxor.u32 %v203, %v205
    %v208 = vmul.u32 %v206, 2146121005
    %v209 = vmul.u32 %v207, 2146121005
    %v210 = vshrl.u32 %v208, 15
    %v211 = vshrl.u32 %v209, 15
    %v212 = vxor.u32 %v208, %v210
    %v213 = vxor.u32 %v209, %v211
    %v214 = vmul.u32 %v212, 2221713035
    %v215 = vmul.u32 %v213, 2221713035
    %v216 = vshrl.u32 %v214, 16
    %v217 = vshrl.u32 %v215, 16
    %v218 = vxor.u32 %v214, %v216
    %v219 = vxor.u32 %v215, %v217
    %vm220 = vcmp.ge.u32.totalorder %v218, 429496730
    %vm221 = vcmp.ge.u32.totalorder %v219, 429496730
    %v222 = vmul.f32 %v178, 1.1111112
    %v223 = vmul.f32 %v181, 1.1111112
    %v224 = vsel %vm220, %v222, 0.0
    %v225 = vsel %vm221, %v223, 0.0
    %v226 = vadd.f32 %v52, %v224
    %v227 = vadd.f32 %v53, %v225
    %228 = vst.msk [vmem:[#allocation9] sm:$0xff] %vm54, %v226
    %229 = vst.msk [vmem:[#allocation9 + $0x8] sm:$0xff] %vm54, %v227
    // Predicated region
    $region30: #{tpu_custom_call.1} parent=1 // pred_check
      _
    $region31: #{tpu_custom_call.1} parent=1 // pred_check_branch
      %231 = sbr.rel (0) target = $region33
    $region32: #{tpu_custom_call.1} parent=1 // pred_region
      %s233 = ssub.s32 256, 256
      %234 = vsyncadd [#allocation6], %s233
      %s235 = sshll.u32 [#allocation9], 4
      %s236 = int_to_ptr.vmem [resolvable:$true] %s235
      %241 = dma.vmem_to_hbm [thread:$0]  %s236, 256, %s6, [#allocation6], 128, 128, 8
    $region33: #{tpu_custom_call.1} parent=1 // pred_fallthru
      _
    // Predicated region
    $region34: #{tpu_custom_call.1} parent=1 // pred_check
      _
    $region35: #{tpu_custom_call.1} parent=1 // pred_check_branch
      %243 = sbr.rel (0) target = $region37
    $region36: #{tpu_custom_call.1} parent=1 // pred_region
      %244 = dma.done [#allocation6], 256
    $region37: #{tpu_custom_call.1} parent=1 // pred_fallthru
      _
    %245 = vsyncpa [#allocation5], 1
    %246 = vsyncpa [#allocation8], 1
    %247 = vsyncpa [#allocation6], 1

</llo_original>
